<compile_context>
chip_gen: v7x
topology: tpu7x:2x2x1
jax: 0.10.0
libtpu: 0.0.40
codegen_flags: <defaults>
</compile_context>

<pallas_src>
import functools

import jax
import jax.numpy as jnp
from jax.experimental import pallas as pl
from jax.experimental.pallas import tpu as pltpu

LANE_WIDTH = 512          # last-dim width of the 2D slab (multiple of 128)
MAX_BLOCK_ROWS = 1024     # 1024 x 512 f32 = 2 MiB per input block
NUM_SHARDS = 2            # leading "parallel" grid axis (v7x: one per TensorCore)


def _rmsle_kernel(pred_ref, act_ref, out_ref, acc_ref, *, block_rows, total_rows):
    c = pl.program_id(0)          # shard ("parallel")
    j = pl.program_id(1)          # step within shard ("arbitrary")
    steps = pl.num_programs(1)

    @pl.when(j == 0)
    def _():
        acc_ref[...] = jnp.zeros_like(acc_ref)

    # Intended global block index (before index_map clamping).
    blk = c * steps + j
    row_start = blk * block_rows

    # Fast path: block lies entirely inside the valid rows -> no mask work,
    # pure VPU accumulate + EUP log1p (steady state for every full block).
    @pl.when(row_start + block_rows <= total_rows)
    def _():
        d = jnp.log1p(pred_ref[...].astype(jnp.float32)) - jnp.log1p(
            act_ref[...].astype(jnp.float32)
        )
        acc_ref[...] += d * d

    # Slow path: the single boundary block (only when total_rows % block_rows
    # != 0). Rows >= total_rows hold undefined DMA data; mask them to 0
    # *before* log1p so they contribute nothing and never produce NaNs.
    # Mask built from a (block_rows, 1) iota; jnp.where broadcasts over lanes.
    @pl.when(jnp.logical_and(row_start < total_rows,
                             row_start + block_rows > total_rows))
    def _():
        row_ids = row_start + jax.lax.broadcasted_iota(
            jnp.int32, (block_rows, 1), 0
        )
        valid = row_ids < total_rows
        p = jnp.where(valid, pred_ref[...].astype(jnp.float32), 0.0)
        a = jnp.where(valid, act_ref[...].astype(jnp.float32), 0.0)
        d = jnp.log1p(p) - jnp.log1p(a)
        acc_ref[...] += d * d

    # Fully out-of-range (clamped duplicate) blocks: both conditions false,
    # compute skipped entirely.

    @pl.when(j == steps - 1)
    def _():
        # Lane-dense per-shard partial: reduce over rows only; cross-lane /
        # cross-shard reduction happens in the (tiny) wrapper epilogue.
        out_ref[...] = jnp.sum(acc_ref[...], axis=0).reshape(out_ref.shape)


def rmsle_loss(pred, actual):
    assert pred.shape == actual.shape
    n_true = pred.size

    p = pred.reshape(-1)
    a = actual.reshape(-1)

    full_rows = n_true // LANE_WIDTH
    rem = n_true - full_rows * LANE_WIDTH

    sq_sum = jnp.float32(0.0)

    if rem:
        # Sub-row remainder (< 512 elements): tiny wrapper-side expression,
        # avoids padding/copying both full inputs through HBM.
        pt = p[full_rows * LANE_WIDTH:].astype(jnp.float32)
        at = a[full_rows * LANE_WIDTH:].astype(jnp.float32)
        dt = jnp.log1p(pt) - jnp.log1p(at)
        sq_sum = sq_sum + jnp.sum(dt * dt)

    if full_rows:
        if rem:
            # Ragged case only: prefix slice (at worst matches the old pad
            # cost; the common aligned case below is a free reshape).
            p2 = p[: full_rows * LANE_WIDTH].reshape(full_rows, LANE_WIDTH)
            a2 = a[: full_rows * LANE_WIDTH].reshape(full_rows, LANE_WIDTH)
        else:
            p2 = p.reshape(full_rows, LANE_WIDTH)
            a2 = a.reshape(full_rows, LANE_WIDTH)

        total_rows = full_rows
        block_rows = min(MAX_BLOCK_ROWS, total_rows)
        n_blocks = pl.cdiv(total_rows, block_rows)
        num_shards = min(NUM_SHARDS, n_blocks)
        steps = pl.cdiv(n_blocks, num_shards)

        def in_map(c, j):
            # Clamp so the DMA never targets a fully out-of-range block; the
            # kernel gates compute by the *intended* index, so clamped
            # duplicate blocks contribute nothing.
            return (jnp.minimum(c * steps + j, n_blocks - 1), 0)

        itemsize = jnp.dtype(pred.dtype).itemsize
        cost = pl.CostEstimate(
            flops=6 * n_true,
            transcendentals=2 * n_true,
            bytes_accessed=2 * n_true * itemsize + num_shards * LANE_WIDTH * 4,
        )

        partials = pl.pallas_call(
            functools.partial(
                _rmsle_kernel, block_rows=block_rows, total_rows=total_rows
            ),
            out_shape=jax.ShapeDtypeStruct(
                (num_shards, 1, LANE_WIDTH), jnp.float32
            ),
            grid_spec=pltpu.PrefetchScalarGridSpec(
                num_scalar_prefetch=0,
                grid=(num_shards, steps),
                in_specs=[
                    pl.BlockSpec((block_rows, LANE_WIDTH), in_map),
                    pl.BlockSpec((block_rows, LANE_WIDTH), in_map),
                ],
                out_specs=pl.BlockSpec(
                    (1, 1, LANE_WIDTH), lambda c, j: (c, 0, 0)
                ),
                scratch_shapes=[
                    pltpu.VMEM((block_rows, LANE_WIDTH), jnp.float32),
                ],
            ),
            compiler_params=pltpu.CompilerParams(
                dimension_semantics=("parallel", "arbitrary"),
            ),
            cost_estimate=cost,
        )(p2, a2)

        sq_sum = sq_sum + jnp.sum(partials)

    # Tiny finalization: mean + sqrt.
    return jnp.sqrt(sq_sum / jnp.float32(n_true))


def rmsle_ref(pred, actual):
    d = jnp.log(pred.astype(jnp.float32) + 1.0) - jnp.log(
        actual.astype(jnp.float32) + 1.0
    )
    return jnp.sqrt(jnp.mean(d * d))


if __name__ == "__main__":
    key = jax.random.PRNGKey(0)
    k1, k2 = jax.random.split(key)
    # NCHW-shaped positive inputs (log(x+1) needs x > -1)
    shape = (2, 4, 16, 16)
    pred = jax.random.uniform(k1, shape, jnp.float32, minval=0.0, maxval=5.0)
    actual = jax.random.uniform(k2, shape, jnp.float32, minval=0.0, maxval=5.0)

    out = rmsle_loss(pred, actual)
    jax.block_until_ready(out)

    ref = rmsle_ref(pred, actual)
    assert jnp.allclose(out, ref, rtol=1e-5, atol=1e-6), (out, ref)
    print("KERNEL_OK")
</pallas_src>

<mosaic_0001>
module attributes {stable_mosaic.version = 11 : i64} {
  func.func @_rmsle_kernel(%arg0: i32, %arg1: i32, %arg2: memref<4x512xf32, #tpu.memory_space<vmem>>, %arg3: memref<4x512xf32, #tpu.memory_space<vmem>>, %arg4: memref<1x1x512xf32, #tpu.memory_space<vmem>>, %arg5: memref<4x512xf32, #tpu.memory_space<vmem>>) attributes {dimension_semantics = [#tpu.dimension_semantics<parallel>, #tpu.dimension_semantics<arbitrary>], iteration_bounds = array<i64: 1, 1>, scalar_prefetch = 0 : i64, scratch_operands = 1 : i64, tpu.core_type = #tpu.core_type<tc>, window_params = [{transform_indices = @transform_0, window_bounds = array<i64: 4, 512>}, {transform_indices = @transform_1, window_bounds = array<i64: 4, 512>}, {transform_indices = @transform_2, window_bounds = array<i64: 1, 1, 512>}]} {
    %c0_i32 = arith.constant 0 : i32
    %0 = arith.cmpi eq, %arg1, %c0_i32 : i32
    %1 = arith.extui %0 : i1 to i32
    %c0_i32_0 = arith.constant 0 : i32
    %2 = arith.cmpi ne, %1, %c0_i32_0 : i32
    scf.if %2 {
      %cst = arith.constant 0.000000e+00 : f32
      %19 = vector.broadcast %cst : f32 to vector<4x512xf32>
      %c0 = arith.constant 0 : index
      %c0_10 = arith.constant 0 : index
      %20 = vector.load %arg5[%c0, %c0_10] : memref<4x512xf32, #tpu.memory_space<vmem>>, vector<4x512xf32>
      tpu.vector_store %arg5[%c0, %c0_10], %19 {strides = array<i32>} : memref<4x512xf32, #tpu.memory_space<vmem>>, vector<4x512xf32>,
    } else {
    }
    %c1_i32 = arith.constant 1 : i32
    %3 = arith.muli %arg0, %c1_i32 : i32
    %4 = arith.addi %3, %arg1 : i32
    %c4_i32 = arith.constant 4 : i32
    %5 = arith.muli %4, %c4_i32 : i32
    %c4_i32_1 = arith.constant 4 : i32
    %6 = arith.addi %5, %c4_i32_1 : i32
    %c4_i32_2 = arith.constant 4 : i32
    %7 = arith.cmpi sle, %6, %c4_i32_2 : i32
    %8 = arith.extui %7 : i1 to i32
    %c0_i32_3 = arith.constant 0 : i32
    %9 = arith.cmpi ne, %8, %c0_i32_3 : i32
    scf.if %9 {
      %c0 = arith.constant 0 : index
      %c0_10 = arith.constant 0 : index
      %19 = vector.load %arg2[%c0, %c0_10] : memref<4x512xf32, #tpu.memory_space<vmem>>, vector<4x512xf32>
      %20 = math.log1p %19 : vector<4x512xf32>
      %c0_11 = arith.constant 0 : index
      %c0_12 = arith.constant 0 : index
      %21 = vector.load %arg3[%c0_11, %c0_12] : memref<4x512xf32, #tpu.memory_space<vmem>>, vector<4x512xf32>
      %22 = math.log1p %21 : vector<4x512xf32>
      %23 = arith.subf %20, %22 : vector<4x512xf32>
      %c0_13 = arith.constant 0 : index
      %c0_14 = arith.constant 0 : index
      %24 = vector.load %arg5[%c0_13, %c0_14] : memref<4x512xf32, #tpu.memory_space<vmem>>, vector<4x512xf32>
      %25 = arith.mulf %23, %23 : vector<4x512xf32>
      %26 = arith.addf %24, %25 : vector<4x512xf32>
      %c0_15 = arith.constant 0 : index
      %c0_16 = arith.constant 0 : index
      %27 = vector.load %arg5[%c0_15, %c0_16] : memref<4x512xf32, #tpu.memory_space<vmem>>, vector<4x512xf32>
      tpu.vector_store %arg5[%c0_15, %c0_16], %26 {strides = array<i32>} : memref<4x512xf32, #tpu.memory_space<vmem>>, vector<4x512xf32>,
    } else {
    }
    %c4_i32_4 = arith.constant 4 : i32
    %10 = arith.cmpi slt, %5, %c4_i32_4 : i32
    %c4_i32_5 = arith.constant 4 : i32
    %11 = arith.addi %5, %c4_i32_5 : i32
    %c4_i32_6 = arith.constant 4 : i32
    %12 = arith.cmpi sgt, %11, %c4_i32_6 : i32
    %13 = arith.andi %10, %12 : i1
    %14 = arith.extui %13 : i1 to i32
    %c0_i32_7 = arith.constant 0 : i32
    %15 = arith.cmpi ne, %14, %c0_i32_7 : i32
    scf.if %15 {
      %19 = tpu.iota {dimensions = array<i32: 0>} : vector<4x1xi32>
      %20 = vector.broadcast %5 : i32 to vector<4x1xi32>
      %21 = arith.addi %20, %19 : vector<4x1xi32>
      %c4_i32_10 = arith.constant 4 : i32
      %22 = vector.broadcast %c4_i32_10 : i32 to vector<4x1xi32>
      %23 = arith.cmpi slt, %21, %22 : vector<4x1xi32>
      %c0 = arith.constant 0 : index
      %c0_11 = arith.constant 0 : index
      %24 = vector.load %arg2[%c0, %c0_11] : memref<4x512xf32, #tpu.memory_space<vmem>>, vector<4x512xf32>
      %cst = arith.constant 0.000000e+00 : f32
      %25 = vector.shape_cast %23 : vector<4x1xi1> to vector<4x1xi1>
      %26 = vector.broadcast %25 : vector<4x1xi1> to vector<4x512xi1>
      %27 = vector.broadcast %cst : f32 to vector<4x512xf32>
      %28 = arith.select %26, %24, %27 : vector<4x512xi1>, vector<4x512xf32>
      %c0_12 = arith.constant 0 : index
      %c0_13 = arith.constant 0 : index
      %29 = vector.load %arg3[%c0_12, %c0_13] : memref<4x512xf32, #tpu.memory_space<vmem>>, vector<4x512xf32>
      %cst_14 = arith.constant 0.000000e+00 : f32
      %30 = vector.shape_cast %23 : vector<4x1xi1> to vector<4x1xi1>
      %31 = vector.broadcast %30 : vector<4x1xi1> to vector<4x512xi1>
      %32 = vector.broadcast %cst_14 : f32 to vector<4x512xf32>
      %33 = arith.select %31, %29, %32 : vector<4x512xi1>, vector<4x512xf32>
      %34 = math.log1p %28 : vector<4x512xf32>
      %35 = math.log1p %33 : vector<4x512xf32>
      %36 = arith.subf %34, %35 : vector<4x512xf32>
      %c0_15 = arith.constant 0 : index
      %c0_16 = arith.constant 0 : index
      %37 = vector.load %arg5[%c0_15, %c0_16] : memref<4x512xf32, #tpu.memory_space<vmem>>, vector<4x512xf32>
      %38 = arith.mulf %36, %36 : vector<4x512xf32>
      %39 = arith.addf %37, %38 : vector<4x512xf32>
      %c0_17 = arith.constant 0 : index
      %c0_18 = arith.constant 0 : index
      %40 = vector.load %arg5[%c0_17, %c0_18] : memref<4x512xf32, #tpu.memory_space<vmem>>, vector<4x512xf32>
      tpu.vector_store %arg5[%c0_17, %c0_18], %39 {strides = array<i32>} : memref<4x512xf32, #tpu.memory_space<vmem>>, vector<4x512xf32>,
    } else {
    }
    %c0_i32_8 = arith.constant 0 : i32
    %16 = arith.cmpi eq, %arg1, %c0_i32_8 : i32
    %17 = arith.extui %16 : i1 to i32
    %c0_i32_9 = arith.constant 0 : i32
    %18 = arith.cmpi ne, %17, %c0_i32_9 : i32
    scf.if %18 {
      %c0 = arith.constant 0 : index
      %c0_10 = arith.constant 0 : index
      %19 = vector.load %arg5[%c0, %c0_10] : memref<4x512xf32, #tpu.memory_space<vmem>>, vector<4x512xf32>
      %cst = arith.constant dense<0.000000e+00> : vector<512xf32>
      %20 = vector.multi_reduction <add>, %19, %cst [0] : vector<4x512xf32> to vector<512xf32>
      %21 = vector.shape_cast %20 : vector<512xf32> to vector<1x1x512xf32>
      %c0_11 = arith.constant 0 : index
      %c0_12 = arith.constant 0 : index
      %c0_13 = arith.constant 0 : index
      %22 = vector.load %arg4[%c0_11, %c0_12, %c0_13] : memref<1x1x512xf32, #tpu.memory_space<vmem>>, vector<1x1x512xf32>
      tpu.vector_store %arg4[%c0_11, %c0_12, %c0_13], %21 {strides = array<i32>} : memref<1x1x512xf32, #tpu.memory_space<vmem>>, vector<1x1x512xf32>,
    } else {
    }
    return
  }
  func.func @transform_0(%arg0: i32, %arg1: i32) -> (i32, i32) {
    %c1_i32 = arith.constant 1 : i32
    %0 = arith.muli %arg0, %c1_i32 : i32
    %1 = arith.addi %0, %arg1 : i32
    %c0_i32 = arith.constant 0 : i32
    %2 = arith.minsi %1, %c0_i32 : i32
    %c0_i32_0 = arith.constant 0 : i32
    %c0_i32_1 = arith.constant 0 : i32
    return %2, %c0_i32_0 : i32, i32
  }
  func.func @transform_1(%arg0: i32, %arg1: i32) -> (i32, i32) {
    %c1_i32 = arith.constant 1 : i32
    %0 = arith.muli %arg0, %c1_i32 : i32
    %1 = arith.addi %0, %arg1 : i32
    %c0_i32 = arith.constant 0 : i32
    %2 = arith.minsi %1, %c0_i32 : i32
    %c0_i32_0 = arith.constant 0 : i32
    %c0_i32_1 = arith.constant 0 : i32
    return %2, %c0_i32_0 : i32, i32
  }
  func.func @transform_2(%arg0: i32, %arg1: i32) -> (i32, i32, i32) {
    %c0_i32 = arith.constant 0 : i32
    %c0_i32_0 = arith.constant 0 : i32
    %c0_i32_1 = arith.constant 0 : i32
    return %arg0, %c0_i32, %c0_i32_0 : i32, i32, i32
  }
}

</mosaic_0001>

<llo_original>
// kernel: tpu_custom_call.1
$region0: #{tpu_custom_call.1}
  #allocation0 [shape = 'u32[]', space=smem, size = 0x4, offset = 0x4, fixed_abs, tag = 'smem constant byte address 0x4 - core index']
  #allocation1 [shape = 'u32[144,128]{1,0:T(1,128)}', space=vmem, size = 0x12000, scoped, tag = 'internal scratch']
  #allocation2 [shape = 'f32[4,512]{1,0:T(4,128)}', space=vmem, size = 0x2000, scoped, tag = 'scratch operand']
  %s0 = inlined_call_operand.hbm [shape: f32[4,512], index: 0, kind: input, shape index: {}]
  %s1 = inlined_call_operand.hbm [shape: f32[4,512], index: 1, kind: input, shape index: {}]
  %s2 = inlined_call_operand.hbm [shape: f32[1,1,512], index: 2, kind: output, shape index: {}]
  %s3 = sld [smem:[#allocation0]]
  $region42: #{tpu_custom_call.1} parent=0
    _
  %s5 = ssub.s32 1, %s3
  %s6 = scalar_select 0, %s5, %s3
  $region1: #{tpu_custom_call.1} parent=0
    #allocation3 [shape = 'u8[8192]{0}', space=vmem, size = 0x2000, scoped, tag = 'input window, operand 0, single buffered']
    #allocation4 [shape = 's32[1]{0}', space=sflag, size = 0x4, scoped, tag = 'scoped memory for tpu_custom_call.1']
    #allocation5 [shape = 's32[1]{0}', space=sflag, size = 0x4, scoped, tag = 'scoped memory for tpu_custom_call.1']
    #allocation6 [shape = 'u8[8192]{0}', space=vmem, size = 0x2000, scoped, tag = 'input window, operand 1, single buffered']
    #allocation7 [shape = 's32[1]{0}', space=sflag, size = 0x4, scoped, tag = 'scoped memory for tpu_custom_call.1']
    #allocation8 [shape = 'u8[2048]{0}', space=vmem, size = 0x800, scoped, tag = 'output window, operand 0, single buffered']
    %7 = vsyncpa [#allocation4], 0
    %8 = vsyncpa [#allocation7], 0
    %9 = vsyncpa [#allocation5], 0
    // Predicated region
    $region2: #{tpu_custom_call.1} parent=1 // pred_check
      _
    $region3: #{tpu_custom_call.1} parent=1 // pred_check_branch
      %11 = sbr.rel (0) target = $region5
    $region4: #{tpu_custom_call.1} parent=1 // pred_region
      %s12 = sadd.s32 0, 0
      %p13 = scmp.lt.s32.totalorder %s12, 0
      %s14 = scalar_select %p13, %s12, 0
      %s16 = ssub.s32 256, 256
      %17 = vsyncadd [#allocation4], %s16
      %s18 = smul.addr %s14, 4
      %s19 = smul.addr %s18, 64
      %s20 = scalar_lea.hbm %s0, %s19
      %s22 = sshll.u32 [#allocation3], 4
      %s23 = int_to_ptr.vmem [resolvable:$true] %s22
      %25 = dma.hbm_to_vmem [thread:$0]  %s20, 256, %s23, [#allocation4]
    $region5: #{tpu_custom_call.1} parent=1 // pred_fallthru
      _
    // Predicated region
    $region6: #{tpu_custom_call.1} parent=1 // pred_check
      _
    $region7: #{tpu_custom_call.1} parent=1 // pred_check_branch
      %27 = sbr.rel (0) target = $region9
    $region8: #{tpu_custom_call.1} parent=1 // pred_region
      %s28 = sadd.s32 0, 0
      %p29 = scmp.lt.s32.totalorder %s28, 0
      %s30 = scalar_select %p29, %s28, 0
      %s32 = ssub.s32 256, 256
      %33 = vsyncadd [#allocation7], %s32
      %s34 = smul.addr %s30, 4
      %s35 = smul.addr %s34, 64
      %s36 = scalar_lea.hbm %s1, %s35
      %s38 = sshll.u32 [#allocation6], 4
      %s39 = int_to_ptr.vmem [resolvable:$true] %s38
      %41 = dma.hbm_to_vmem [thread:$0]  %s36, 256, %s39, [#allocation7]
    $region9: #{tpu_custom_call.1} parent=1 // pred_fallthru
      _
    // Predicated region
    $region10: #{tpu_custom_call.1} parent=1 // pred_check
      _
    $region11: #{tpu_custom_call.1} parent=1 // pred_check_branch
      %43 = sbr.rel (0) target = $region13
    $region12: #{tpu_custom_call.1} parent=1 // pred_region
      %44 = dma.done [#allocation4], 256
    $region13: #{tpu_custom_call.1} parent=1 // pred_fallthru
      _
    // Predicated region
    $region14: #{tpu_custom_call.1} parent=1 // pred_check
      _
    $region15: #{tpu_custom_call.1} parent=1 // pred_check_branch
      %46 = sbr.rel (0) target = $region17
    $region16: #{tpu_custom_call.1} parent=1 // pred_region
      %47 = dma.done [#allocation7], 256
    $region17: #{tpu_custom_call.1} parent=1 // pred_fallthru
      _
    %s48 = sadd.s32 0, 0
    %p49 = scmp.lt.s32.totalorder %s48, 0
    %s50 = scalar_select %p49, %s48, 0
    %s51 = sadd.s32 0, 0
    %p52 = scmp.lt.s32.totalorder %s51, 0
    %s53 = scalar_select %p52, %s51, 0
    %p54 = scmp.eq.s32.totalorder 0, 0
    // Predicated region
    $region18: #{tpu_custom_call.1} parent=1 // pred_check
      %p55 = pneg %p54
    $region19: #{tpu_custom_call.1} parent=1 // pred_check_branch
      %57 = sbr.rel (%p55) target = $region21
    $region20: #{tpu_custom_call.1} parent=1 // pred_region
      %58 = vst [vmem:[#allocation2] sm:$0xff] 0.0
      %59 = vst [vmem:[#allocation2 + $0x8] sm:$0xff] 0.0
    $region21: #{tpu_custom_call.1} parent=1 // pred_fallthru
      _
    %s60 = sadd.s32 0, 0
    %s61 = smul.u32 %s60, 4
    %s62 = sadd.s32 %s61, 4
    %p63 = scmp.le.s32.totalorder %s62, 4
    // Predicated region
    $region22: #{tpu_custom_call.1} parent=1 // pred_check
      %p64 = pneg %p63
    $region23: #{tpu_custom_call.1} parent=1 // pred_check_branch
      %66 = sbr.rel (%p64) target = $region25
    $region24: #{tpu_custom_call.1} parent=1 // pred_region
      %v67 = vld [vmem:[#allocation3] sm:$0xff]
      %v68 = vld [vmem:[#allocation3 + $0x8] sm:$0xff]
      %v69 = vadd.f32 %v67, 1.0
      %v70 = vlog2.pop %v69
      %v71 = vmul.f32 %v70, 0.6931472
      %v72 = vmul.f32 -0.5, %v67
      %v73 = vadd.f32 %v72, 1.0
      %v74 = vmul.f32 %v73, %v67
      %v75 = vand.u32 2147483647, %v67
      %vm76 = vcmp.lt.f32.partialorder %v75, 0.0004427343
      %v77 = vsel %vm76, %v74, %v71
      %v78 = vadd.f32 %v68, 1.0
      %v79 = vlog2.pop %v78
      %v80 = vmul.f32 %v79, 0.6931472
      %v81 = vmul.f32 -0.5, %v68
      %v82 = vadd.f32 %v81, 1.0
      %v83 = vmul.f32 %v82, %v68
      %v84 = vand.u32 2147483647, %v68
      %vm85 = vcmp.lt.f32.partialorder %v84, 0.0004427343
      %v86 = vsel %vm85, %v83, %v80
      %v87 = vld [vmem:[#allocation6] sm:$0xff]
      %v88 = vld [vmem:[#allocation6 + $0x8] sm:$0xff]
      %v89 = vadd.f32 %v87, 1.0
      %v90 = vlog2.pop %v89
      %v91 = vmul.f32 %v90, 0.6931472
      %v92 = vmul.f32 -0.5, %v87
      %v93 = vadd.f32 %v92, 1.0
      %v94 = vmul.f32 %v93, %v87
      %v95 = vand.u32 2147483647, %v87
      %vm96 = vcmp.lt.f32.partialorder %v95, 0.0004427343
      %v97 = vsel %vm96, %v94, %v91
      %v98 = vadd.f32 %v88, 1.0
      %v99 = vlog2.pop %v98
      %v100 = vmul.f32 %v99, 0.6931472
      %v101 = vmul.f32 -0.5, %v88
      %v102 = vadd.f32 %v101, 1.0
      %v103 = vmul.f32 %v102, %v88
      %v104 = vand.u32 2147483647, %v88
      %vm105 = vcmp.lt.f32.partialorder %v104, 0.0004427343
      %v106 = vsel %vm105, %v103, %v100
      %v107 = vsub.f32 %v77, %v97
      %v108 = vsub.f32 %v86, %v106
      %v109 = vld [vmem:[#allocation2] sm:$0xff]
      %v110 = vld [vmem:[#allocation2 + $0x8] sm:$0xff]
      %v111 = vmul.f32 %v107, %v107
      %v112 = vmul.f32 %v108, %v108
      %v113 = vadd.f32 %v109, %v111
      %v114 = vadd.f32 %v110, %v112
      %115 = vst [vmem:[#allocation2] sm:$0xff] %v113
      %116 = vst [vmem:[#allocation2 + $0x8] sm:$0xff] %v114
    $region25: #{tpu_custom_call.1} parent=1 // pred_fallthru
      _
    %p117 = scmp.lt.s32.totalorder %s61, 4
    %p118 = scmp.gt.s32.totalorder %s62, 4
    %p119 = pnand %p117, %p118
    %p120 = pneg %p119
    // Predicated region
    $region26: #{tpu_custom_call.1} parent=1 // pred_check
      _
    $region27: #{tpu_custom_call.1} parent=1 // pred_check_branch
      %122 = sbr.rel (%p119) target = $region29
    $region28: #{tpu_custom_call.1} parent=1 // pred_region
      %v123 = vlaneseq
      %v124 = vshrl.u32 %v123, 7
      %v125 = vstv %s61
      %v126 = vadd.s32 %v125, %v124
      %vm127 = vcmp.lt.s32.totalorder %v126, 4
      %v128 = vld [vmem:[#allocation3] sm:$0xff]
      %v129 = vld [vmem:[#allocation3 + $0x8] sm:$0xff]
      %v130 = vsel %vm127, 1, 0
      %vm131 = vcmp.eq.s32.totalorder %v130, 1
      %v134 = vcombine.high %v128, %v128
      %v135 = vcombine.high %v129, %v129
      %v138 = vsel %vm131, %v128, 0.0
      %v139 = vsel %vm131, %v134, 0.0
      %v140 = vsel %vm131, %v129, 0.0
      %v141 = vsel %vm131, %v135, 0.0
      %v142 = vld [vmem:[#allocation6] sm:$0xff]
      %v143 = vld [vmem:[#allocation6 + $0x8] sm:$0xff]
      %v146 = vcombine.high %v142, %v142
      %v147 = vcombine.high %v143, %v143
      %v150 = vsel %vm131, %v142, 0.0
      %v151 = vsel %vm131, %v146, 0.0
      %v152 = vsel %vm131, %v143, 0.0
      %v153 = vsel %vm131, %v147, 0.0
      %v154 = vadd.f32 %v138, 1.0
      %v155 = vlog2.pop %v154
      %v156 = vmul.f32 %v155, 0.6931472
      %v157 = vmul.f32 -0.5, %v138
      %v158 = vadd.f32 %v157, 1.0
      %v159 = vmul.f32 %v158, %v138
      %v160 = vand.u32 2147483647, %v138
      %vm161 = vcmp.lt.f32.partialorder %v160, 0.0004427343
      %v162 = vsel %vm161, %v159, %v156
      %v163 = vadd.f32 %v139, 1.0
      %v164 = vlog2.pop %v163
      %v165 = vmul.f32 %v164, 0.6931472
      %v166 = vmul.f32 -0.5, %v139
      %v167 = vadd.f32 %v166, 1.0
      %v168 = vmul.f32 %v167, %v139
      %v169 = vand.u32 2147483647, %v139
      %vm170 = vcmp.lt.f32.partialorder %v169, 0.0004427343
      %v171 = vsel %vm170, %v168, %v165
      %v172 = vadd.f32 %v140, 1.0
      %v173 = vlog2.pop %v172
      %v174 = vmul.f32 %v173, 0.6931472
      %v175 = vmul.f32 -0.5, %v140
      %v176 = vadd.f32 %v175, 1.0
      %v177 = vmul.f32 %v176, %v140
      %v178 = vand.u32 2147483647, %v140
      %vm179 = vcmp.lt.f32.partialorder %v178, 0.0004427343
      %v180 = vsel %vm179, %v177, %v174
      %v181 = vadd.f32 %v141, 1.0
      %v182 = vlog2.pop %v181
      %v183 = vmul.f32 %v182, 0.6931472
      %v184 = vmul.f32 -0.5, %v141
      %v185 = vadd.f32 %v184, 1.0
      %v186 = vmul.f32 %v185, %v141
      %v187 = vand.u32 2147483647, %v141
      %vm188 = vcmp.lt.f32.partialorder %v187, 0.0004427343
      %v189 = vsel %vm188, %v186, %v183
      %v190 = vadd.f32 %v150, 1.0
      %v191 = vlog2.pop %v190
      %v192 = vmul.f32 %v191, 0.6931472
      %v193 = vmul.f32 -0.5, %v150
      %v194 = vadd.f32 %v193, 1.0
      %v195 = vmul.f32 %v194, %v150
      %v196 = vand.u32 2147483647, %v150
      %vm197 = vcmp.lt.f32.partialorder %v196, 0.0004427343
      %v198 = vsel %vm197, %v195, %v192
      %v199 = vadd.f32 %v151, 1.0
      %v200 = vlog2.pop %v199
      %v201 = vmul.f32 %v200, 0.6931472
      %v202 = vmul.f32 -0.5, %v151
      %v203 = vadd.f32 %v202, 1.0
      %v204 = vmul.f32 %v203, %v151
      %v205 = vand.u32 2147483647, %v151
      %vm206 = vcmp.lt.f32.partialorder %v205, 0.0004427343
      %v207 = vsel %vm206, %v204, %v201
      %v208 = vadd.f32 %v152, 1.0
      %v209 = vlog2.pop %v208
      %v210 = vmul.f32 %v209, 0.6931472
      %v211 = vmul.f32 -0.5, %v152
      %v212 = vadd.f32 %v211, 1.0
      %v213 = vmul.f32 %v212, %v152
      %v214 = vand.u32 2147483647, %v152
      %vm215 = vcmp.lt.f32.partialorder %v214, 0.0004427343
      %v216 = vsel %vm215, %v213, %v210
      %v217 = vadd.f32 %v153, 1.0
      %v218 = vlog2.pop %v217
      %v219 = vmul.f32 %v218, 0.6931472
      %v220 = vmul.f32 -0.5, %v153
      %v221 = vadd.f32 %v220, 1.0
      %v222 = vmul.f32 %v221, %v153
      %v223 = vand.u32 2147483647, %v153
      %vm224 = vcmp.lt.f32.partialorder %v223, 0.0004427343
      %v225 = vsel %vm224, %v222, %v219
      %v226 = vsub.f32 %v162, %v198
      %v227 = vsub.f32 %v171, %v207
      %v228 = vsub.f32 %v180, %v216
      %v229 = vsub.f32 %v189, %v225
      %v230 = vld [vmem:[#allocation2] sm:$0xff]
      %v231 = vld [vmem:[#allocation2 + $0x8] sm:$0xff]
      %v232 = vmul.f32 %v226, %v226
      %v233 = vmul.f32 %v227, %v227
      %v234 = vmul.f32 %v228, %v228
      %v235 = vmul.f32 %v229, %v229
      %v240 = vcombine.low %v232, %v233
      %v241 = vcombine.low %v234, %v235
      %v244 = vadd.f32 %v230, %v240
      %v245 = vadd.f32 %v231, %v241
      %246 = vst [vmem:[#allocation2] sm:$0xff] %v244
      %247 = vst [vmem:[#allocation2 + $0x8] sm:$0xff] %v245
    $region29: #{tpu_custom_call.1} parent=1 // pred_fallthru
      _
    // Predicated region
    $region30: #{tpu_custom_call.1} parent=1 // pred_check
      %p248 = pneg %p54
    $region31: #{tpu_custom_call.1} parent=1 // pred_check_branch
      %250 = sbr.rel (%p248) target = $region33
    $region32: #{tpu_custom_call.1} parent=1 // pred_region
      %v251 = vld [vmem:[#allocation2] sm:$0xff]
      %v252 = vld [vmem:[#allocation2 + $0x8] sm:$0xff]
      %v255 = vcombine.high %v251, %v251
      %v256 = vcombine.high %v252, %v252
      %vm259 = vcmask 1043456
      %v260 = vsel %vm259, %v251, 0.0
      %v261 = vrot.slane %v260, 4
      %v262 = vadd.f32 %v260, %v261
      %v263 = vrot.slane %v262, 2
      %v264 = vadd.f32 %v262, %v263
      %v265 = vrot.slane %v264, 1
      %v266 = vadd.f32 %v264, %v265
      %v267 = vsel %vm259, %v255, 0.0
      %v268 = vrot.slane %v267, 4
      %v269 = vadd.f32 %v267, %v268
      %v270 = vrot.slane %v269, 2
      %v271 = vadd.f32 %v269, %v270
      %v272 = vrot.slane %v271, 1
      %v273 = vadd.f32 %v271, %v272
      %v274 = vsel %vm259, %v252, 0.0
      %v275 = vrot.slane %v274, 4
      %v276 = vadd.f32 %v274, %v275
      %v277 = vrot.slane %v276, 2
      %v278 = vadd.f32 %v276, %v277
      %v279 = vrot.slane %v278, 1
      %v280 = vadd.f32 %v278, %v279
      %v281 = vsel %vm259, %v256, 0.0
      %v282 = vrot.slane %v281, 4
      %v283 = vadd.f32 %v281, %v282
      %v284 = vrot.slane %v283, 2
      %v285 = vadd.f32 %v283, %v284
      %v286 = vrot.slane %v285, 1
      %v287 = vadd.f32 %v285, %v286
      %v292 = vcombine.low %v266, %v273
      %v293 = vcombine.low %v280, %v287
      %v295 = vunpack.c.l.s4 1966171168
      %v296 = vunpack.c.0.s8 %v295
      %v297 = vlaneseq
      %v298 = vshrl.u32 %v297, 7
      %v299 = vsub.s32 %v296, %v298
      %v300 = vrot.slane %v292, %v299
      %v302 = vunpack.c.l.s4 1966171168
      %v303 = vunpack.c.0.s8 %v302
      %v304 = vlaneseq
      %v305 = vshrl.u32 %v304, 7
      %v306 = vsub.s32 %v303, %v305
      %v307 = vrot.slane %v293, %v306
      %v308 = vcombine.low %v300, %v307
      %v310 = vunpack.c.l.s4 1966171168
      %v311 = vunpack.c.0.s8 %v310
      %v312 = vlaneseq
      %v313 = vshrl.u32 %v312, 7
      %v314 = vsub.s32 %v311, %v313
      %v315 = vrot.slane %v308, %v314
      %v317 = vlaneseq
      %vm318 = vcmp.ge.s32.totalorder %v317, 0
      %vm319 = vcmp.lt.s32.totalorder %v317, 512
      %vm320 = vmand %vm318, %vm319
      %321 = vst.msk [vmem:[#allocation8] sm:$0xf] %vm320, %v315
    $region33: #{tpu_custom_call.1} parent=1 // pred_fallthru
      _
    // Predicated region
    $region34: #{tpu_custom_call.1} parent=1 // pred_check
      _
    $region35: #{tpu_custom_call.1} parent=1 // pred_check_branch
      %323 = sbr.rel (0) target = $region37
    $region36: #{tpu_custom_call.1} parent=1 // pred_region
      %s325 = ssub.s32 64, 64
      %326 = vsyncadd [#allocation5], %s325
      %s328 = sshll.u32 [#allocation8], 4
      %s329 = int_to_ptr.vmem [resolvable:$true] %s328
      %331 = dma.vmem_to_hbm [thread:$0]  %s329, 64, %s2, [#allocation5]
    $region37: #{tpu_custom_call.1} parent=1 // pred_fallthru
      _
    // Predicated region
    $region38: #{tpu_custom_call.1} parent=1 // pred_check
      _
    $region39: #{tpu_custom_call.1} parent=1 // pred_check_branch
      %333 = sbr.rel (0) target = $region41
    $region40: #{tpu_custom_call.1} parent=1 // pred_region
      %334 = dma.done [#allocation5], 64
    $region41: #{tpu_custom_call.1} parent=1 // pred_fallthru
      _
    %335 = vsyncpa [#allocation4], 1
    %336 = vsyncpa [#allocation7], 1
    %337 = vsyncpa [#allocation5], 1

</llo_original>
